<compile_context>
chip_gen: v6e
topology: v6e:2x2x1
jax: 0.10.0
libtpu: 0.0.40
codegen_flags: <defaults>
</compile_context>

<pallas_src>
import jax
import jax.numpy as jnp
from jax.experimental import pallas as pl
from jax.experimental.pallas import tpu as pltpu


def _round_up(x, m):
    return (x + m - 1) // m * m


def gaussian_mlp_kernel(z_ref, w1_ref, b1_ref, w23_ref, b23_ref, out_ref):
    # fc1: MXU matmul with f32 accumulation; bias add (VPU) + tanh (EUP) in f32.
    h = jnp.tanh(
        jnp.dot(z_ref[...], w1_ref[...], preferred_element_type=jnp.float32)
        + b1_ref[...]
    )
    # Fused fc2/fc3 head: cast h to the weight dtype (bf16 on MXU-native paths),
    # accumulate in f32, one lane-dense bias add, single unmasked store.
    out = (
        jnp.dot(h.astype(w23_ref.dtype), w23_ref[...],
                preferred_element_type=jnp.float32)
        + b23_ref[...]
    )
    out_ref[...] = out.astype(out_ref.dtype)


def prepare_gaussian_mlp_params(w1, b1, w2, b2, w3, b3, compute_dtype=jnp.bfloat16):
    """One-time weight prep: transpose to (in, out), fuse fc2/fc3, pad lanes to 128.

    Call once outside the per-step forward path and reuse the result.
    PyTorch Linear layout: w* is (out_features, in_features), b* is (out_features,).
    Biases stay f32 (added after the f32 accumulation), weights use compute_dtype.
    """
    hidden_size, input_size = w1.shape
    output_size = w2.shape[0]

    # Lane padding to 128 keeps loads/matmuls/stores unmasked. (If a large-hidden
    # config ever becomes MXU-bound on v6e/v7x, round to 256 instead — irrelevant
    # while mem-bound.)
    h_p = _round_up(hidden_size, 128)
    out2_p = _round_up(2 * output_size, 128)

    # fc1: (out, in) -> (in, hidden), zero-padded on the hidden (lane) axis.
    w1_t = (jnp.zeros((input_size, h_p), compute_dtype)
            .at[:, :hidden_size].set(jnp.transpose(w1).astype(compute_dtype)))
    b1_p = (jnp.zeros((1, h_p), jnp.float32)
            .at[0, :hidden_size].set(b1.astype(jnp.float32)))
    # Padded hidden units see tanh(0 + 0) = 0 and multiply zero rows of W23 -> exact.

    # Fused fc2/fc3 head: (hidden, 2*out), zero-padded on both axes.
    w23 = jnp.concatenate([jnp.transpose(w2), jnp.transpose(w3)], axis=1)
    w23_p = (jnp.zeros((h_p, out2_p), compute_dtype)
             .at[:hidden_size, :2 * output_size].set(w23.astype(compute_dtype)))
    b23_p = (jnp.zeros((1, out2_p), jnp.float32)
             .at[0, :2 * output_size].set(
                 jnp.concatenate([b2, b3]).astype(jnp.float32)))

    return dict(w1=w1_t, b1=b1_p, w23=w23_p, b23=b23_p,
                input_size=input_size, hidden_size=hidden_size,
                output_size=output_size)


def gaussian_mlp_forward(z, params, *, batch_tile=1024):
    """z: [B, input_size]. Returns (mu, log_sigma_sq), each [B, output_size], dtype z.dtype."""
    B, input_size = z.shape
    out_size = params["output_size"]
    w1, b1, w23, b23 = params["w1"], params["b1"], params["w23"], params["b23"]
    in_k = w1.shape[0]        # unpadded contraction dim (== input_size)
    h_p = w1.shape[1]         # padded hidden (multiple of 128)
    out2_p = w23.shape[1]     # padded 2*output (multiple of 128)
    assert in_k == input_size

    compute_dtype = w1.dtype
    out_dtype = z.dtype
    z_c = z.astype(compute_dtype)

    # Batch tile: multiple of 16 sublanes (covers bf16 and f32 operands), capped by
    # the (padded) batch size. Large tiles amortize the ~0.35 us per-grid-step cost.
    tb = _round_up(min(batch_tile, _round_up(B, 16)), 16)
    # Keep the batch grid at >= 2 steps when that still gives >=512-row tiles, so v7x
    # can shard the "parallel" batch axis across both TensorCores.
    half = _round_up(pl.cdiv(_round_up(B, 16), 2), 16)
    if half >= 512:
        tb = min(tb, half)
    b_pad = _round_up(B, tb)
    if b_pad != B:
        z_c = jnp.pad(z_c, ((0, b_pad - B), (0, 0)))
    grid = (b_pad // tb,)

    # VMEM budget: single-buffered resident params, double-buffered streamed z/out
    # tiles, and the materialized f32 fc1 intermediate (+ its compute-dtype cast copy).
    itemsize = jnp.dtype(compute_dtype).itemsize
    out_itemsize = jnp.dtype(out_dtype).itemsize
    vmem_bytes = (
        (in_k * h_p + h_p * out2_p) * itemsize + (h_p + out2_p) * 4   # resident params
        + 2 * tb * in_k * itemsize                                    # z double-buffer
        + 2 * tb * out2_p * out_itemsize                              # out double-buffer
        + tb * h_p * (4 + itemsize)                                   # fc1 intermediate
        + 2 * 1024 * 1024)                                            # headroom
    try:
        vmem_cap = int(0.75 * pltpu.get_tpu_info().vmem_capacity_bytes)
    except Exception:
        vmem_cap = 48 * 1024 * 1024   # conservative: fits 64 MiB (v7x) parts
    vmem_bytes = int(min(max(vmem_bytes, 4 * 1024 * 1024), vmem_cap))

    def _call(single_buffer_residents):
        res = ({"pipeline_mode": pl.Buffered(1)} if single_buffer_residents else {})
        return pl.pallas_call(
            gaussian_mlp_kernel,
            out_shape=jax.ShapeDtypeStruct((b_pad, out2_p), out_dtype),
            grid=grid,
            in_specs=[
                pl.BlockSpec((tb, in_k), lambda i: (i, 0)),            # z (streamed)
                pl.BlockSpec((in_k, h_p), lambda i: (0, 0), **res),    # W1 (resident)
                pl.BlockSpec((1, h_p), lambda i: (0, 0), **res),       # b1 (resident)
                pl.BlockSpec((h_p, out2_p), lambda i: (0, 0), **res),  # W23 (resident)
                pl.BlockSpec((1, out2_p), lambda i: (0, 0), **res),    # b23 (resident)
            ],
            out_specs=pl.BlockSpec((tb, out2_p), lambda i: (i, 0)),
            compiler_params=pltpu.CompilerParams(
                dimension_semantics=("parallel",),   # v7x shards batch over both TCs
                vmem_limit_bytes=vmem_bytes,
            ),
        )(z_c, w1, b1, w23, b23)

    try:
        out = _call(True)
    except Exception:
        # Fallback for jax versions that reject pl.Buffered(1) on a top-level
        # pallas_call BlockSpec; default double-buffering is still correct.
        out = _call(False)

    # Single slice of the unpadded region, then split the fused slab into the heads.
    fused = out[:B, :2 * out_size]
    return fused[:, :out_size], fused[:, out_size:]


if __name__ == "__main__":
    # Small shapes consistent with the module: batch=8, input=16, hidden=32, output=16.
    B, input_size, hidden_size, output_size = 8, 16, 32, 16

    key = jax.random.PRNGKey(0)
    keys = jax.random.split(key, 7)
    z = jax.random.normal(keys[0], (B, input_size), dtype=jnp.float32)
    # PyTorch Linear layout: weight (out, in), bias (out,).
    w1 = jax.random.normal(keys[1], (hidden_size, input_size), dtype=jnp.float32) * 0.1
    b1 = jax.random.normal(keys[2], (hidden_size,), dtype=jnp.float32) * 0.1
    w2 = jax.random.normal(keys[3], (output_size, hidden_size), dtype=jnp.float32) * 0.1
    b2 = jax.random.normal(keys[4], (output_size,), dtype=jnp.float32) * 0.1
    w3 = jax.random.normal(keys[5], (output_size, hidden_size), dtype=jnp.float32) * 0.1
    b3 = jax.random.normal(keys[6], (output_size,), dtype=jnp.float32) * 0.1

    # Pure-JAX reference.
    h_ref = jnp.tanh(z @ w1.T + b1)
    mu_ref = h_ref @ w2.T + b2
    lv_ref = h_ref @ w3.T + b3

    # f32-compute path: exact (f32 accumulation, zero-padding is exact).
    params_f32 = prepare_gaussian_mlp_params(w1, b1, w2, b2, w3, b3,
                                             compute_dtype=jnp.float32)
    mu32, lv32 = gaussian_mlp_forward(z, params_f32)
    jax.block_until_ready((mu32, lv32))
    assert mu32.shape == (B, output_size) and lv32.shape == (B, output_size)
    assert jnp.allclose(mu32, mu_ref, atol=1e-5), "mu mismatch (f32)"
    assert jnp.allclose(lv32, lv_ref, atol=1e-5), "log_sigma_sq mismatch (f32)"

    # Default (bf16-compute) path: looser tolerance for bf16 weight/activation rounding.
    params = prepare_gaussian_mlp_params(w1, b1, w2, b2, w3, b3)
    mu, log_sigma_sq = gaussian_mlp_forward(z, params)
    jax.block_until_ready((mu, log_sigma_sq))
    assert mu.shape == (B, output_size) and log_sigma_sq.shape == (B, output_size)
    assert jnp.allclose(mu, mu_ref, atol=3e-2, rtol=3e-2), "mu mismatch (bf16)"
    assert jnp.allclose(log_sigma_sq, lv_ref, atol=3e-2, rtol=3e-2), \
        "log_sigma_sq mismatch (bf16)"

    print("KERNEL_OK")
</pallas_src>

<mosaic_0001>
module attributes {stable_mosaic.version = 11 : i64} {
  func.func @gaussian_mlp_kernel(%arg0: i32, %arg1: memref<16x16xf32, #tpu.memory_space<vmem>>, %arg2: memref<16x128xf32, #tpu.memory_space<vmem>>, %arg3: memref<1x128xf32, #tpu.memory_space<vmem>>, %arg4: memref<128x128xf32, #tpu.memory_space<vmem>>, %arg5: memref<1x128xf32, #tpu.memory_space<vmem>>, %arg6: memref<16x128xf32, #tpu.memory_space<vmem>>) attributes {dimension_semantics = [#tpu.dimension_semantics<parallel>], iteration_bounds = array<i64: 1>, scalar_prefetch = 0 : i64, scratch_operands = 0 : i64, tpu.core_type = #tpu.core_type<tc>, window_params = [{transform_indices = @transform_0, window_bounds = array<i64: 16, 16>}, {pipeline_mode = #tpu.pipeline_mode<synchronous>, transform_indices = @transform_1, window_bounds = array<i64: 16, 128>}, {pipeline_mode = #tpu.pipeline_mode<synchronous>, transform_indices = @transform_2, window_bounds = array<i64: 1, 128>}, {pipeline_mode = #tpu.pipeline_mode<synchronous>, transform_indices = @transform_3, window_bounds = array<i64: 128, 128>}, {pipeline_mode = #tpu.pipeline_mode<synchronous>, transform_indices = @transform_4, window_bounds = array<i64: 1, 128>}, {transform_indices = @transform_5, window_bounds = array<i64: 16, 128>}]} {
    %c0 = arith.constant 0 : index
    %c0_0 = arith.constant 0 : index
    %0 = vector.load %arg1[%c0, %c0_0] : memref<16x16xf32, #tpu.memory_space<vmem>>, vector<16x16xf32>
    %c0_1 = arith.constant 0 : index
    %c0_2 = arith.constant 0 : index
    %1 = vector.load %arg2[%c0_1, %c0_2] : memref<16x128xf32, #tpu.memory_space<vmem>>, vector<16x128xf32>
    %cst = arith.constant dense<0.000000e+00> : vector<16x128xf32>
    %2 = tpu.matmul %0, %1, %cst {dimension_numbers = #tpu.dot_dimension_numbers<[1], [0], [0], [1], [0, 0, 1, 1], [], []>} : vector<16x16xf32>, vector<16x128xf32>, vector<16x128xf32> -> vector<16x128xf32>
    %c0_3 = arith.constant 0 : index
    %c0_4 = arith.constant 0 : index
    %3 = vector.load %arg3[%c0_3, %c0_4] : memref<1x128xf32, #tpu.memory_space<vmem>>, vector<1x128xf32>
    %4 = vector.broadcast %3 : vector<1x128xf32> to vector<16x128xf32>
    %5 = arith.addf %2, %4 : vector<16x128xf32>
    %6 = math.tanh %5 : vector<16x128xf32>
    %c0_5 = arith.constant 0 : index
    %c0_6 = arith.constant 0 : index
    %7 = vector.load %arg4[%c0_5, %c0_6] : memref<128x128xf32, #tpu.memory_space<vmem>>, vector<128x128xf32>
    %cst_7 = arith.constant dense<0.000000e+00> : vector<16x128xf32>
    %8 = tpu.matmul %6, %7, %cst_7 {dimension_numbers = #tpu.dot_dimension_numbers<[1], [0], [0], [1], [0, 0, 1, 1], [], []>} : vector<16x128xf32>, vector<128x128xf32>, vector<16x128xf32> -> vector<16x128xf32>
    %c0_8 = arith.constant 0 : index
    %c0_9 = arith.constant 0 : index
    %9 = vector.load %arg5[%c0_8, %c0_9] : memref<1x128xf32, #tpu.memory_space<vmem>>, vector<1x128xf32>
    %10 = vector.broadcast %9 : vector<1x128xf32> to vector<16x128xf32>
    %11 = arith.addf %8, %10 : vector<16x128xf32>
    %c0_10 = arith.constant 0 : index
    %c0_11 = arith.constant 0 : index
    %12 = vector.load %arg6[%c0_10, %c0_11] : memref<16x128xf32, #tpu.memory_space<vmem>>, vector<16x128xf32>
    tpu.vector_store %arg6[%c0_10, %c0_11], %11 {strides = array<i32>} : memref<16x128xf32, #tpu.memory_space<vmem>>, vector<16x128xf32>,
    return
  }
  func.func @transform_0(%arg0: i32) -> (i32, i32) {
    %c0_i32 = arith.constant 0 : i32
    %c0_i32_0 = arith.constant 0 : i32
    return %arg0, %c0_i32 : i32, i32
  }
  func.func @transform_1(%arg0: i32) -> (i32, i32) {
    %c0_i32 = arith.constant 0 : i32
    %c0_i32_0 = arith.constant 0 : i32
    %c0_i32_1 = arith.constant 0 : i32
    return %c0_i32, %c0_i32_0 : i32, i32
  }
  func.func @transform_2(%arg0: i32) -> (i32, i32) {
    %c0_i32 = arith.constant 0 : i32
    %c0_i32_0 = arith.constant 0 : i32
    %c0_i32_1 = arith.constant 0 : i32
    return %c0_i32, %c0_i32_0 : i32, i32
  }
  func.func @transform_3(%arg0: i32) -> (i32, i32) {
    %c0_i32 = arith.constant 0 : i32
    %c0_i32_0 = arith.constant 0 : i32
    %c0_i32_1 = arith.constant 0 : i32
    return %c0_i32, %c0_i32_0 : i32, i32
  }
  func.func @transform_4(%arg0: i32) -> (i32, i32) {
    %c0_i32 = arith.constant 0 : i32
    %c0_i32_0 = arith.constant 0 : i32
    %c0_i32_1 = arith.constant 0 : i32
    return %c0_i32, %c0_i32_0 : i32, i32
  }
  func.func @transform_5(%arg0: i32) -> (i32, i32) {
    %c0_i32 = arith.constant 0 : i32
    %c0_i32_0 = arith.constant 0 : i32
    return %arg0, %c0_i32 : i32, i32
  }
}

module attributes {stable_mosaic.version = 11 : i64} {
  func.func @gaussian_mlp_kernel(%arg0: i32, %arg1: memref<16x16xf32, #tpu.memory_space<vmem>>, %arg2: memref<16x128xf32, #tpu.memory_space<vmem>>, %arg3: memref<1x128xf32, #tpu.memory_space<vmem>>, %arg4: memref<128x128xf32, #tpu.memory_space<vmem>>, %arg5: memref<1x128xf32, #tpu.memory_space<vmem>>, %arg6: memref<16x128xf32, #tpu.memory_space<vmem>>) attributes {dimension_semantics = [#tpu.dimension_semantics<parallel>], iteration_bounds = array<i64: 1>, scalar_prefetch = 0 : i64, scratch_operands = 0 : i64, tpu.core_type = #tpu.core_type<tc>, window_params = [{transform_indices = @transform_0, window_bounds = array<i64: 16, 16>}, {pipeline_mode = #tpu.pipeline_mode<synchronous>, transform_indices = @transform_1, window_bounds = array<i64: 16, 128>}, {pipeline_mode = #tpu.pipeline_mode<synchronous>, transform_indices = @transform_2, window_bounds = array<i64: 1, 128>}, {pipeline_mode = #tpu.pipeline_mode<synchronous>, transform_indices = @transform_3, window_bounds = array<i64: 128, 128>}, {pipeline_mode = #tpu.pipeline_mode<synchronous>, transform_indices = @transform_4, window_bounds = array<i64: 1, 128>}, {transform_indices = @transform_5, window_bounds = array<i64: 16, 128>}]} {
    %c0 = arith.constant 0 : index
    %c0_0 = arith.constant 0 : index
    %0 = vector.load %arg1[%c0, %c0_0] : memref<16x16xf32, #tpu.memory_space<vmem>>, vector<16x16xf32>
    %c0_1 = arith.constant 0 : index
    %c0_2 = arith.constant 0 : index
    %1 = vector.load %arg2[%c0_1, %c0_2] : memref<16x128xf32, #tpu.memory_space<vmem>>, vector<16x128xf32>
    %cst = arith.constant dense<0.000000e+00> : vector<16x128xf32>
    %2 = tpu.matmul %0, %1, %cst {dimension_numbers = #tpu.dot_dimension_numbers<[1], [0], [0], [1], [0, 0, 1, 1], [], []>} : vector<16x16xf32>, vector<16x128xf32>, vector<16x128xf32> -> vector<16x128xf32>
    %c0_3 = arith.constant 0 : index
    %c0_4 = arith.constant 0 : index
    %3 = vector.load %arg3[%c0_3, %c0_4] : memref<1x128xf32, #tpu.memory_space<vmem>>, vector<1x128xf32>
    %4 = vector.broadcast %3 : vector<1x128xf32> to vector<16x128xf32>
    %5 = arith.addf %2, %4 : vector<16x128xf32>
    %6 = math.tanh %5 : vector<16x128xf32>
    %c0_5 = arith.constant 0 : index
    %c0_6 = arith.constant 0 : index
    %7 = vector.load %arg4[%c0_5, %c0_6] : memref<128x128xf32, #tpu.memory_space<vmem>>, vector<128x128xf32>
    %cst_7 = arith.constant dense<0.000000e+00> : vector<16x128xf32>
    %8 = tpu.matmul %6, %7, %cst_7 {dimension_numbers = #tpu.dot_dimension_numbers<[1], [0], [0], [1], [0, 0, 1, 1], [], []>} : vector<16x128xf32>, vector<128x128xf32>, vector<16x128xf32> -> vector<16x128xf32>
    %c0_8 = arith.constant 0 : index
    %c0_9 = arith.constant 0 : index
    %9 = vector.load %arg5[%c0_8, %c0_9] : memref<1x128xf32, #tpu.memory_space<vmem>>, vector<1x128xf32>
    %10 = vector.broadcast %9 : vector<1x128xf32> to vector<16x128xf32>
    %11 = arith.addf %8, %10 : vector<16x128xf32>
    %c0_10 = arith.constant 0 : index
    %c0_11 = arith.constant 0 : index
    %12 = vector.load %arg6[%c0_10, %c0_11] : memref<16x128xf32, #tpu.memory_space<vmem>>, vector<16x128xf32>
    tpu.vector_store %arg6[%c0_10, %c0_11], %11 {strides = array<i32>} : memref<16x128xf32, #tpu.memory_space<vmem>>, vector<16x128xf32>,
    return
  }
  func.func @transform_0(%arg0: i32) -> (i32, i32) {
    %c0_i32 = arith.constant 0 : i32
    %c0_i32_0 = arith.constant 0 : i32
    return %arg0, %c0_i32 : i32, i32
  }
  func.func @transform_1(%arg0: i32) -> (i32, i32) {
    %c0_i32 = arith.constant 0 : i32
    %c0_i32_0 = arith.constant 0 : i32
    %c0_i32_1 = arith.constant 0 : i32
    return %c0_i32, %c0_i32_0 : i32, i32
  }
  func.func @transform_2(%arg0: i32) -> (i32, i32) {
    %c0_i32 = arith.constant 0 : i32
    %c0_i32_0 = arith.constant 0 : i32
    %c0_i32_1 = arith.constant 0 : i32
    return %c0_i32, %c0_i32_0 : i32, i32
  }
  func.func @transform_3(%arg0: i32) -> (i32, i32) {
    %c0_i32 = arith.constant 0 : i32
    %c0_i32_0 = arith.constant 0 : i32
    %c0_i32_1 = arith.constant 0 : i32
    return %c0_i32, %c0_i32_0 : i32, i32
  }
  func.func @transform_4(%arg0: i32) -> (i32, i32) {
    %c0_i32 = arith.constant 0 : i32
    %c0_i32_0 = arith.constant 0 : i32
    %c0_i32_1 = arith.constant 0 : i32
    return %c0_i32, %c0_i32_0 : i32, i32
  }
  func.func @transform_5(%arg0: i32) -> (i32, i32) {
    %c0_i32 = arith.constant 0 : i32
    %c0_i32_0 = arith.constant 0 : i32
    return %arg0, %c0_i32 : i32, i32
  }
}

</mosaic_0001>

<llo_original>
// kernel: tpu_custom_call.1
$region0: #{tpu_custom_call.1}
  #allocation0 [shape = 'u32[]', space=smem, size = 0x4, offset = 0x4, fixed_abs, tag = 'smem constant byte address 0x4 - core index']
  #allocation1 [shape = 'u32[144,128]{1,0:T(1,128)}', space=vmem, size = 0x12000, scoped, tag = 'internal scratch']
  %s0 = inlined_call_operand.hbm [shape: f32[16,16], index: 0, kind: input, shape index: {}]
  %s1 = inlined_call_operand.hbm [shape: f32[16,128], index: 1, kind: input, shape index: {}]
  %s2 = inlined_call_operand.vmem [shape: f32[1,128], index: 2, kind: input, shape index: {}]
  %s3 = inlined_call_operand.hbm [shape: f32[128,128], index: 3, kind: input, shape index: {}]
  %s4 = inlined_call_operand.vmem [shape: f32[1,128], index: 4, kind: input, shape index: {}]
  %s5 = inlined_call_operand.hbm [shape: f32[16,128], index: 5, kind: output, shape index: {}]
  %s6 = sld [smem:[#allocation0]]
  $region42: #{tpu_custom_call.1} parent=0
    _
  %s8 = ssub.s32 1, %s6
  %s9 = scalar_select 0, %s8, %s6
  $region1: #{tpu_custom_call.1} parent=0
    #allocation2 [shape = 'u8[8192]{0}', space=vmem, size = 0x2000, scoped, tag = 'input window, operand 0, single buffered']
    #allocation3 [shape = 's32[1]{0}', space=sflag, size = 0x4, scoped, tag = 'scoped memory for tpu_custom_call.1']
    #allocation4 [shape = 's32[1]{0}', space=sflag, size = 0x4, scoped, tag = 'scoped memory for tpu_custom_call.1']
    #allocation5 [shape = 'u8[8192]{0}', space=vmem, size = 0x2000, scoped, tag = 'input window, operand 1, single buffered']
    #allocation6 [shape = 's32[1]{0}', space=sflag, size = 0x4, scoped, tag = 'scoped memory for tpu_custom_call.1']
    #allocation7 [shape = 'u8[65536]{0}', space=vmem, size = 0x10000, scoped, tag = 'input window, operand 3, single buffered']
    #allocation8 [shape = 'u8[8192]{0}', space=vmem, size = 0x2000, scoped, tag = 'output window, operand 0, single buffered']
    %10 = vsyncpa [#allocation3], 0
    %11 = vsyncpa [#allocation6], 0
    %12 = vsyncpa [#allocation4], 0
    // Predicated region
    $region2: #{tpu_custom_call.1} parent=1 // pred_check
      _
    $region3: #{tpu_custom_call.1} parent=1 // pred_check_branch
      %14 = sbr.rel (0) target = $region5
    $region4: #{tpu_custom_call.1} parent=1 // pred_region
      %s16 = ssub.s32 256, 256
      %17 = vsyncadd [#allocation3], %s16
      %s18 = sshll.u32 [#allocation2], 4
      %s19 = int_to_ptr.vmem [resolvable:$true] %s18
      %24 = dma.hbm_to_vmem [thread:$0]  %s0, 256, %s19, [#allocation3], 128, 128, 8
    $region5: #{tpu_custom_call.1} parent=1 // pred_fallthru
      _
    // Predicated region
    $region6: #{tpu_custom_call.1} parent=1 // pred_check
      _
    $region7: #{tpu_custom_call.1} parent=1 // pred_check_branch
      %26 = sbr.rel (0) target = $region9
    $region8: #{tpu_custom_call.1} parent=1 // pred_region
      %s28 = ssub.s32 256, 256
      %29 = vsyncadd [#allocation6], %s28
      %s30 = sshll.u32 [#allocation5], 4
      %s31 = int_to_ptr.vmem [resolvable:$true] %s30
      %36 = dma.hbm_to_vmem [thread:$0]  %s1, 256, %s31, [#allocation6], 128, 128, 8
    $region9: #{tpu_custom_call.1} parent=1 // pred_fallthru
      _
    // Predicated region
    $region10: #{tpu_custom_call.1} parent=1 // pred_check
      _
    $region11: #{tpu_custom_call.1} parent=1 // pred_check_branch
      %38 = sbr.rel (0) target = $region13
    $region12: #{tpu_custom_call.1} parent=1 // pred_region
      _
    $region13: #{tpu_custom_call.1} parent=1 // pred_fallthru
      _
    // Predicated region
    $region14: #{tpu_custom_call.1} parent=1 // pred_check
      _
    $region15: #{tpu_custom_call.1} parent=1 // pred_check_branch
      %40 = sbr.rel (0) target = $region17
    $region16: #{tpu_custom_call.1} parent=1 // pred_region
      %s42 = ssub.s32 2048, 2048
      %43 = vsyncadd [#allocation6], %s42
      %s44 = sshll.u32 [#allocation7], 4
      %s45 = int_to_ptr.vmem [resolvable:$true] %s44
      %50 = dma.hbm_to_vmem [thread:$0]  %s3, 2048, %s45, [#allocation6], 128, 128, 8
    $region17: #{tpu_custom_call.1} parent=1 // pred_fallthru
      _
    // Predicated region
    $region18: #{tpu_custom_call.1} parent=1 // pred_check
      _
    $region19: #{tpu_custom_call.1} parent=1 // pred_check_branch
      %52 = sbr.rel (0) target = $region21
    $region20: #{tpu_custom_call.1} parent=1 // pred_region
      _
    $region21: #{tpu_custom_call.1} parent=1 // pred_fallthru
      _
    // Predicated region
    $region22: #{tpu_custom_call.1} parent=1 // pred_check
      _
    $region23: #{tpu_custom_call.1} parent=1 // pred_check_branch
      %54 = sbr.rel (0) target = $region25
    $region24: #{tpu_custom_call.1} parent=1 // pred_region
      %55 = dma.done [#allocation3], 256
    $region25: #{tpu_custom_call.1} parent=1 // pred_fallthru
      _
    // Predicated region
    $region26: #{tpu_custom_call.1} parent=1 // pred_check
      _
    $region27: #{tpu_custom_call.1} parent=1 // pred_check_branch
      %57 = sbr.rel (0) target = $region29
    $region28: #{tpu_custom_call.1} parent=1 // pred_region
      %58 = dma.done [#allocation6], 256
    $region29: #{tpu_custom_call.1} parent=1 // pred_fallthru
      _
    // Predicated region
    $region30: #{tpu_custom_call.1} parent=1 // pred_check
      _
    $region31: #{tpu_custom_call.1} parent=1 // pred_check_branch
      %60 = sbr.rel (0) target = $region33
    $region32: #{tpu_custom_call.1} parent=1 // pred_region
      %61 = dma.done [#allocation6], 2048
    $region33: #{tpu_custom_call.1} parent=1 // pred_fallthru
      _
    %v62 = vld [vmem:[#allocation2] sm:$0xff]
    %v63 = vld [vmem:[#allocation2 + $0x8] sm:$0xff]
    %v64 = vld [vmem:[#allocation5] sm:$0xff]
    %v65 = vld [vmem:[#allocation5 + $0x8] sm:$0xff]
    %v66 = vld [vmem:[%s2] sm:$0x1]
    %v68 = vlaneseq
    %v69 = vshrl.u32 %v68, 7
    %v70 = vsub.s32 0, %v69
    %v71 = vrot.slane %v66, %v70
    %vm73 = vcmask 130048
    %v75 = vsel %vm73, %v62, 0
    %v78 = vsel %vm73, %v63, 0
    %80 = vmatprep.subr.mxu0 0.0
    %81 = vmatpush1.msra.mxu0 0.0
    %82 = vmatprep.subr.mxu0 0.0
    %83 = vmatpush1.msra.mxu0 0.0
    %84 = vmatprep.subr.mxu0 0.0
    %85 = vmatpush1.msra.mxu0 0.0
    %86 = vmatprep.subr.mxu0 0.0
    %87 = vmatpush1.msra.mxu0 0.0
    %88 = vmatprep.subr.mxu0 0.0
    %89 = vmatpush1.msra.mxu0 0.0
    %90 = vmatprep.subr.mxu0 0.0
    %91 = vmatpush1.msra.mxu0 0.0
    %92 = vmatprep.subr.mxu0 0.0
    %93 = vmatpush1.msra.mxu0 0.0
    %94 = vmatprep.subr.mxu0 0.0
    %95 = vmatpush1.msra.mxu0 0.0
    %96 = vmatprep.subr.mxu0 0.0
    %97 = vmatpush1.msra.mxu0 0.0
    %98 = vmatprep.subr.mxu0 0.0
    %99 = vmatpush1.msra.mxu0 0.0
    %100 = vmatprep.subr.mxu0 0.0
    %101 = vmatpush1.msra.mxu0 0.0
    %102 = vmatprep.subr.mxu0 0.0
    %103 = vmatpush1.msra.mxu0 0.0
    %104 = vmatprep.subr.mxu0 0.0
    %105 = vmatpush1.msra.mxu0 0.0
    %106 = vmatprep.subr.mxu0 0.0
    %107 = vmatpush1.msra.mxu0 0.0
    %108 = vmatprep.subr.mxu0 0.0
    %109 = vmatpush1.msra.mxu0 %v65
    %110 = vmatprep.subr.mxu0 0.0
    %111 = vmatpush1.msra.mxu0 %v64
    %112 = vmatprep.subr.mxu0 0.0
    %113 = vmatpush2.msra.mxu0 0.0
    %114 = vmatprep.subr.mxu0 0.0
    %115 = vmatpush2.msra.mxu0 0.0
    %116 = vmatprep.subr.mxu0 0.0
    %117 = vmatpush2.msra.mxu0 0.0
    %118 = vmatprep.subr.mxu0 0.0
    %119 = vmatpush2.msra.mxu0 0.0
    %120 = vmatprep.subr.mxu0 0.0
    %121 = vmatpush2.msra.mxu0 0.0
    %122 = vmatprep.subr.mxu0 0.0
    %123 = vmatpush2.msra.mxu0 0.0
    %124 = vmatprep.subr.mxu0 0.0
    %125 = vmatpush2.msra.mxu0 0.0
    %126 = vmatprep.subr.mxu0 0.0
    %127 = vmatpush2.msra.mxu0 0.0
    %128 = vmatprep.subr.mxu0 0.0
    %129 = vmatpush2.msra.mxu0 0.0
    %130 = vmatprep.subr.mxu0 0.0
    %131 = vmatpush2.msra.mxu0 0.0
    %132 = vmatprep.subr.mxu0 0.0
    %133 = vmatpush2.msra.mxu0 0.0
    %134 = vmatprep.subr.mxu0 0.0
    %135 = vmatpush2.msra.mxu0 0.0
    %136 = vmatprep.subr.mxu0 0.0
    %137 = vmatpush2.msra.mxu0 0.0
    %138 = vmatprep.subr.mxu0 0.0
    %139 = vmatpush2.msra.mxu0 0.0
    %140 = vmatprep.subr.mxu0 0.0
    %141 = vmatpush2.msra.mxu0 0.0
    %142 = vmatprep.subr.mxu0 0.0
    %143 = vmatpush2.msra.mxu0 0.0
    %144 = vmatprep.mubr.f32.mxu0 0.0
    %145 = vmatmul.mubr.f32.gmra.mxu0 %v75
    %v146 = vpop.f32.mrf.mxu0
    %v147 = vadd.f32 %v71, %v146
    %v148 = vpop.f32.mrf.mxu0
    %149 = vmatprep.mubr.f32.mxu0 0.0
    %150 = vmatmul.mubr.f32.gmra.mxu0 %v78
    %v151 = vpop.f32.mrf.mxu0
    %v152 = vadd.f32 %v71, %v151
    %v153 = vpop.f32.mrf.mxu0
    %154 = vdwg.mxu0
    %v155 = vtanh.pop %v147
    %v156 = vtanh.pop %v152
    %v157 = vld [vmem:[#allocation7] sm:$0xff]
    %v158 = vld [vmem:[#allocation7 + $0x8] sm:$0xff]
    %v159 = vld [vmem:[#allocation7 + $0x10] sm:$0xff]
    %v160 = vld [vmem:[#allocation7 + $0x18] sm:$0xff]
    %v161 = vld [vmem:[#allocation7 + $0x20] sm:$0xff]
    %v162 = vld [vmem:[#allocation7 + $0x28] sm:$0xff]
    %v163 = vld [vmem:[#allocation7 + $0x30] sm:$0xff]
    %v164 = vld [vmem:[#allocation7 + $0x38] sm:$0xff]
    %v165 = vld [vmem:[#allocation7 + $0x40] sm:$0xff]
    %v166 = vld [vmem:[#allocation7 + $0x48] sm:$0xff]
    %v167 = vld [vmem:[#allocation7 + $0x50] sm:$0xff]
    %v168 = vld [vmem:[#allocation7 + $0x58] sm:$0xff]
    %v169 = vld [vmem:[#allocation7 + $0x60] sm:$0xff]
    %v170 = vld [vmem:[#allocation7 + $0x68] sm:$0xff]
    %v171 = vld [vmem:[#allocation7 + $0x70] sm:$0xff]
    %v172 = vld [vmem:[#allocation7 + $0x78] sm:$0xff]
    %v173 = vld [vmem:[%s4] sm:$0x1]
    %v175 = vlaneseq
    %v176 = vshrl.u32 %v175, 7
    %v177 = vsub.s32 0, %v176
    %v178 = vrot.slane %v173, %v177
    %180 = vmatprep.subr.mxu0 0.0
    %181 = vmatpush1.msra.mxu0 %v172
    %182 = vmatprep.subr.mxu0 0.0
    %183 = vmatpush1.msra.mxu0 %v171
    %184 = vmatprep.subr.mxu0 0.0
    %185 = vmatpush1.msra.mxu0 %v170
    %186 = vmatprep.subr.mxu0 0.0
    %187 = vmatpush1.msra.mxu0 %v169
    %188 = vmatprep.subr.mxu0 0.0
    %189 = vmatpush1.msra.mxu0 %v168
    %190 = vmatprep.subr.mxu0 0.0
    %191 = vmatpush1.msra.mxu0 %v167
    %192 = vmatprep.subr.mxu0 0.0
    %193 = vmatpush1.msra.mxu0 %v166
    %194 = vmatprep.subr.mxu0 0.0
    %195 = vmatpush1.msra.mxu0 %v165
    %196 = vmatprep.subr.mxu0 0.0
    %197 = vmatpush1.msra.mxu0 %v164
    %198 = vmatprep.subr.mxu0 0.0
    %199 = vmatpush1.msra.mxu0 %v163
    %200 = vmatprep.subr.mxu0 0.0
    %201 = vmatpush1.msra.mxu0 %v162
    %202 = vmatprep.subr.mxu0 0.0
    %203 = vmatpush1.msra.mxu0 %v161
    %204 = vmatprep.subr.mxu0 0.0
    %205 = vmatpush1.msra.mxu0 %v160
    %206 = vmatprep.subr.mxu0 0.0
    %207 = vmatpush1.msra.mxu0 %v159
    %208 = vmatprep.subr.mxu0 0.0
    %209 = vmatpush1.msra.mxu0 %v158
    %210 = vmatprep.subr.mxu0 0.0
    %211 = vmatpush1.msra.mxu0 %v157
    %212 = vmatprep.subr.mxu0 0.0
    %213 = vmatpush2.msra.mxu0 0.0
    %214 = vmatprep.subr.mxu0 0.0
    %215 = vmatpush2.msra.mxu0 0.0
    %216 = vmatprep.subr.mxu0 0.0
    %217 = vmatpush2.msra.mxu0 0.0
    %218 = vmatprep.subr.mxu0 0.0
    %219 = vmatpush2.msra.mxu0 0.0
    %220 = vmatprep.subr.mxu0 0.0
    %221 = vmatpush2.msra.mxu0 0.0
    %222 = vmatprep.subr.mxu0 0.0
    %223 = vmatpush2.msra.mxu0 0.0
    %224 = vmatprep.subr.mxu0 0.0
    %225 = vmatpush2.msra.mxu0 0.0
    %226 = vmatprep.subr.mxu0 0.0
    %227 = vmatpush2.msra.mxu0 0.0
    %228 = vmatprep.subr.mxu0 0.0
    %229 = vmatpush2.msra.mxu0 0.0
    %230 = vmatprep.subr.mxu0 0.0
    %231 = vmatpush2.msra.mxu0 0.0
    %232 = vmatprep.subr.mxu0 0.0
    %233 = vmatpush2.msra.mxu0 0.0
    %234 = vmatprep.subr.mxu0 0.0
    %235 = vmatpush2.msra.mxu0 0.0
    %236 = vmatprep.subr.mxu0 0.0
    %237 = vmatpush2.msra.mxu0 0.0
    %238 = vmatprep.subr.mxu0 0.0
    %239 = vmatpush2.msra.mxu0 0.0
    %240 = vmatprep.subr.mxu0 0.0
    %241 = vmatpush2.msra.mxu0 0.0
    %242 = vmatprep.subr.mxu0 0.0
    %243 = vmatpush2.msra.mxu0 0.0
    %244 = vmatprep.mubr.f32.mxu0 0.0
    %245 = vmatmul.mubr.f32.gmra.mxu0 %v155
    %v246 = vpop.f32.mrf.mxu0
    %v247 = vadd.f32 %v178, %v246
    %v248 = vpop.f32.mrf.mxu0
    %249 = vmatprep.mubr.f32.mxu0 0.0
    %250 = vmatmul.mubr.f32.gmra.mxu0 %v156
    %v251 = vpop.f32.mrf.mxu0
    %v252 = vadd.f32 %v178, %v251
    %v253 = vpop.f32.mrf.mxu0
    %254 = vdwg.mxu0
    %255 = vst [vmem:[#allocation8] sm:$0xff] %v247
    %256 = vst [vmem:[#allocation8 + $0x8] sm:$0xff] %v252
    // Predicated region
    $region34: #{tpu_custom_call.1} parent=1 // pred_check
      _
    $region35: #{tpu_custom_call.1} parent=1 // pred_check_branch
      %258 = sbr.rel (0) target = $region37
    $region36: #{tpu_custom_call.1} parent=1 // pred_region
      %s260 = ssub.s32 256, 256
      %261 = vsyncadd [#allocation4], %s260
      %s262 = sshll.u32 [#allocation8], 4
      %s263 = int_to_ptr.vmem [resolvable:$true] %s262
      %268 = dma.vmem_to_hbm [thread:$0]  %s263, 256, %s5, [#allocation4], 128, 128, 8
    $region37: #{tpu_custom_call.1} parent=1 // pred_fallthru
      _
    // Predicated region
    $region38: #{tpu_custom_call.1} parent=1 // pred_check
      _
    $region39: #{tpu_custom_call.1} parent=1 // pred_check_branch
      %270 = sbr.rel (0) target = $region41
    $region40: #{tpu_custom_call.1} parent=1 // pred_region
      %271 = dma.done [#allocation4], 256
    $region41: #{tpu_custom_call.1} parent=1 // pred_fallthru
      _
    %272 = vsyncpa [#allocation3], 1
    %273 = vsyncpa [#allocation6], 1
    %274 = vsyncpa [#allocation4], 1

// kernel: tpu_custom_call.1
$region0: #{tpu_custom_call.1}
  #allocation0 [shape = 'u32[]', space=smem, size = 0x4, offset = 0x4, fixed_abs, tag = 'smem constant byte address 0x4 - core index']
  #allocation1 [shape = 'u32[144,128]{1,0:T(1,128)}', space=vmem, size = 0x12000, scoped, tag = 'internal scratch']
  %s0 = inlined_call_operand.hbm [shape: f32[16,16], index: 0, kind: input, shape index: {}]
  %s1 = inlined_call_operand.hbm [shape: f32[16,128], index: 1, kind: input, shape index: {}]
  %s2 = inlined_call_operand.vmem [shape: f32[1,128], index: 2, kind: input, shape index: {}]
  %s3 = inlined_call_operand.hbm [shape: f32[128,128], index: 3, kind: input, shape index: {}]
  %s4 = inlined_call_operand.vmem [shape: f32[1,128], index: 4, kind: input, shape index: {}]
  %s5 = inlined_call_operand.hbm [shape: f32[16,128], index: 5, kind: output, shape index: {}]
  %s6 = sld [smem:[#allocation0]]
  $region42: #{tpu_custom_call.1} parent=0
    _
  %s8 = ssub.s32 1, %s6
  %s9 = scalar_select 0, %s8, %s6
  $region1: #{tpu_custom_call.1} parent=0
    #allocation2 [shape = 'u8[8192]{0}', space=vmem, size = 0x2000, scoped, tag = 'input window, operand 0, single buffered']
    #allocation3 [shape = 's32[1]{0}', space=sflag, size = 0x4, scoped, tag = 'scoped memory for tpu_custom_call.1']
    #allocation4 [shape = 's32[1]{0}', space=sflag, size = 0x4, scoped, tag = 'scoped memory for tpu_custom_call.1']
    #allocation5 [shape = 'u8[8192]{0}', space=vmem, size = 0x2000, scoped, tag = 'input window, operand 1, single buffered']
    #allocation6 [shape = 's32[1]{0}', space=sflag, size = 0x4, scoped, tag = 'scoped memory for tpu_custom_call.1']
    #allocation7 [shape = 'u8[65536]{0}', space=vmem, size = 0x10000, scoped, tag = 'input window, operand 3, single buffered']
    #allocation8 [shape = 'u8[8192]{0}', space=vmem, size = 0x2000, scoped, tag = 'output window, operand 0, single buffered']
    %10 = vsyncpa [#allocation3], 0
    %11 = vsyncpa [#allocation6], 0
    %12 = vsyncpa [#allocation4], 0
    // Predicated region
    $region2: #{tpu_custom_call.1} parent=1 // pred_check
      _
    $region3: #{tpu_custom_call.1} parent=1 // pred_check_branch
      %14 = sbr.rel (0) target = $region5
    $region4: #{tpu_custom_call.1} parent=1 // pred_region
      %s16 = ssub.s32 256, 256
      %17 = vsyncadd [#allocation3], %s16
      %s18 = sshll.u32 [#allocation2], 4
      %s19 = int_to_ptr.vmem [resolvable:$true] %s18
      %24 = dma.hbm_to_vmem [thread:$0]  %s0, 256, %s19, [#allocation3], 128, 128, 8
    $region5: #{tpu_custom_call.1} parent=1 // pred_fallthru
      _
    // Predicated region
    $region6: #{tpu_custom_call.1} parent=1 // pred_check
      _
    $region7: #{tpu_custom_call.1} parent=1 // pred_check_branch
      %26 = sbr.rel (0) target = $region9
    $region8: #{tpu_custom_call.1} parent=1 // pred_region
      %s28 = ssub.s32 256, 256
      %29 = vsyncadd [#allocation6], %s28
      %s30 = sshll.u32 [#allocation5], 4
      %s31 = int_to_ptr.vmem [resolvable:$true] %s30
      %36 = dma.hbm_to_vmem [thread:$0]  %s1, 256, %s31, [#allocation6], 128, 128, 8
    $region9: #{tpu_custom_call.1} parent=1 // pred_fallthru
      _
    // Predicated region
    $region10: #{tpu_custom_call.1} parent=1 // pred_check
      _
    $region11: #{tpu_custom_call.1} parent=1 // pred_check_branch
      %38 = sbr.rel (0) target = $region13
    $region12: #{tpu_custom_call.1} parent=1 // pred_region
      _
    $region13: #{tpu_custom_call.1} parent=1 // pred_fallthru
      _
    // Predicated region
    $region14: #{tpu_custom_call.1} parent=1 // pred_check
      _
    $region15: #{tpu_custom_call.1} parent=1 // pred_check_branch
      %40 = sbr.rel (0) target = $region17
    $region16: #{tpu_custom_call.1} parent=1 // pred_region
      %s42 = ssub.s32 2048, 2048
      %43 = vsyncadd [#allocation6], %s42
      %s44 = sshll.u32 [#allocation7], 4
      %s45 = int_to_ptr.vmem [resolvable:$true] %s44
      %50 = dma.hbm_to_vmem [thread:$0]  %s3, 2048, %s45, [#allocation6], 128, 128, 8
    $region17: #{tpu_custom_call.1} parent=1 // pred_fallthru
      _
    // Predicated region
    $region18: #{tpu_custom_call.1} parent=1 // pred_check
      _
    $region19: #{tpu_custom_call.1} parent=1 // pred_check_branch
      %52 = sbr.rel (0) target = $region21
    $region20: #{tpu_custom_call.1} parent=1 // pred_region
      _
    $region21: #{tpu_custom_call.1} parent=1 // pred_fallthru
      _
    // Predicated region
    $region22: #{tpu_custom_call.1} parent=1 // pred_check
      _
    $region23: #{tpu_custom_call.1} parent=1 // pred_check_branch
      %54 = sbr.rel (0) target = $region25
    $region24: #{tpu_custom_call.1} parent=1 // pred_region
      %55 = dma.done [#allocation3], 256
    $region25: #{tpu_custom_call.1} parent=1 // pred_fallthru
      _
    // Predicated region
    $region26: #{tpu_custom_call.1} parent=1 // pred_check
      _
    $region27: #{tpu_custom_call.1} parent=1 // pred_check_branch
      %57 = sbr.rel (0) target = $region29
    $region28: #{tpu_custom_call.1} parent=1 // pred_region
      %58 = dma.done [#allocation6], 256
    $region29: #{tpu_custom_call.1} parent=1 // pred_fallthru
      _
    // Predicated region
    $region30: #{tpu_custom_call.1} parent=1 // pred_check
      _
    $region31: #{tpu_custom_call.1} parent=1 // pred_check_branch
      %60 = sbr.rel (0) target = $region33
    $region32: #{tpu_custom_call.1} parent=1 // pred_region
      %61 = dma.done [#allocation6], 2048
    $region33: #{tpu_custom_call.1} parent=1 // pred_fallthru
      _
    %v62 = vld [vmem:[#allocation2] sm:$0xff]
    %v63 = vld [vmem:[#allocation2 + $0x8] sm:$0xff]
    %v64 = vld [vmem:[#allocation5] sm:$0xff]
    %v65 = vld [vmem:[#allocation5 + $0x8] sm:$0xff]
    %v66 = vld [vmem:[%s2] sm:$0x1]
    %v68 = vlaneseq
    %v69 = vshrl.u32 %v68, 7
    %v70 = vsub.s32 0, %v69
    %v71 = vrot.slane %v66, %v70
    %vm73 = vcmask 130048
    %v75 = vsel %vm73, %v62, 0
    %v78 = vsel %vm73, %v63, 0
    %80 = vmatprep.subr.mxu0 0.0
    %81 = vmatpush1.msra.mxu0 0.0
    %82 = vmatprep.subr.mxu0 0.0
    %83 = vmatpush1.msra.mxu0 0.0
    %84 = vmatprep.subr.mxu0 0.0
    %85 = vmatpush1.msra.mxu0 0.0
    %86 = vmatprep.subr.mxu0 0.0
    %87 = vmatpush1.msra.mxu0 0.0
    %88 = vmatprep.subr.mxu0 0.0
    %89 = vmatpush1.msra.mxu0 0.0
    %90 = vmatprep.subr.mxu0 0.0
    %91 = vmatpush1.msra.mxu0 0.0
    %92 = vmatprep.subr.mxu0 0.0
    %93 = vmatpush1.msra.mxu0 0.0
    %94 = vmatprep.subr.mxu0 0.0
    %95 = vmatpush1.msra.mxu0 0.0
    %96 = vmatprep.subr.mxu0 0.0
    %97 = vmatpush1.msra.mxu0 0.0
    %98 = vmatprep.subr.mxu0 0.0
    %99 = vmatpush1.msra.mxu0 0.0
    %100 = vmatprep.subr.mxu0 0.0
    %101 = vmatpush1.msra.mxu0 0.0
    %102 = vmatprep.subr.mxu0 0.0
    %103 = vmatpush1.msra.mxu0 0.0
    %104 = vmatprep.subr.mxu0 0.0
    %105 = vmatpush1.msra.mxu0 0.0
    %106 = vmatprep.subr.mxu0 0.0
    %107 = vmatpush1.msra.mxu0 0.0
    %108 = vmatprep.subr.mxu0 0.0
    %109 = vmatpush1.msra.mxu0 %v65
    %110 = vmatprep.subr.mxu0 0.0
    %111 = vmatpush1.msra.mxu0 %v64
    %112 = vmatprep.subr.mxu0 0.0
    %113 = vmatpush2.msra.mxu0 0.0
    %114 = vmatprep.subr.mxu0 0.0
    %115 = vmatpush2.msra.mxu0 0.0
    %116 = vmatprep.subr.mxu0 0.0
    %117 = vmatpush2.msra.mxu0 0.0
    %118 = vmatprep.subr.mxu0 0.0
    %119 = vmatpush2.msra.mxu0 0.0
    %120 = vmatprep.subr.mxu0 0.0
    %121 = vmatpush2.msra.mxu0 0.0
    %122 = vmatprep.subr.mxu0 0.0
    %123 = vmatpush2.msra.mxu0 0.0
    %124 = vmatprep.subr.mxu0 0.0
    %125 = vmatpush2.msra.mxu0 0.0
    %126 = vmatprep.subr.mxu0 0.0
    %127 = vmatpush2.msra.mxu0 0.0
    %128 = vmatprep.subr.mxu0 0.0
    %129 = vmatpush2.msra.mxu0 0.0
    %130 = vmatprep.subr.mxu0 0.0
    %131 = vmatpush2.msra.mxu0 0.0
    %132 = vmatprep.subr.mxu0 0.0
    %133 = vmatpush2.msra.mxu0 0.0
    %134 = vmatprep.subr.mxu0 0.0
    %135 = vmatpush2.msra.mxu0 0.0
    %136 = vmatprep.subr.mxu0 0.0
    %137 = vmatpush2.msra.mxu0 0.0
    %138 = vmatprep.subr.mxu0 0.0
    %139 = vmatpush2.msra.mxu0 0.0
    %140 = vmatprep.subr.mxu0 0.0
    %141 = vmatpush2.msra.mxu0 0.0
    %142 = vmatprep.subr.mxu0 0.0
    %143 = vmatpush2.msra.mxu0 0.0
    %144 = vmatprep.mubr.f32.mxu0 0.0
    %145 = vmatmul.mubr.f32.gmra.mxu0 %v75
    %v146 = vpop.f32.mrf.mxu0
    %v147 = vadd.f32 %v71, %v146
    %v148 = vpop.f32.mrf.mxu0
    %149 = vmatprep.mubr.f32.mxu0 0.0
    %150 = vmatmul.mubr.f32.gmra.mxu0 %v78
    %v151 = vpop.f32.mrf.mxu0
    %v152 = vadd.f32 %v71, %v151
    %v153 = vpop.f32.mrf.mxu0
    %154 = vdwg.mxu0
    %v155 = vtanh.pop %v147
    %v156 = vtanh.pop %v152
    %v157 = vld [vmem:[#allocation7] sm:$0xff]
    %v158 = vld [vmem:[#allocation7 + $0x8] sm:$0xff]
    %v159 = vld [vmem:[#allocation7 + $0x10] sm:$0xff]
    %v160 = vld [vmem:[#allocation7 + $0x18] sm:$0xff]
    %v161 = vld [vmem:[#allocation7 + $0x20] sm:$0xff]
    %v162 = vld [vmem:[#allocation7 + $0x28] sm:$0xff]
    %v163 = vld [vmem:[#allocation7 + $0x30] sm:$0xff]
    %v164 = vld [vmem:[#allocation7 + $0x38] sm:$0xff]
    %v165 = vld [vmem:[#allocation7 + $0x40] sm:$0xff]
    %v166 = vld [vmem:[#allocation7 + $0x48] sm:$0xff]
    %v167 = vld [vmem:[#allocation7 + $0x50] sm:$0xff]
    %v168 = vld [vmem:[#allocation7 + $0x58] sm:$0xff]
    %v169 = vld [vmem:[#allocation7 + $0x60] sm:$0xff]
    %v170 = vld [vmem:[#allocation7 + $0x68] sm:$0xff]
    %v171 = vld [vmem:[#allocation7 + $0x70] sm:$0xff]
    %v172 = vld [vmem:[#allocation7 + $0x78] sm:$0xff]
    %v173 = vld [vmem:[%s4] sm:$0x1]
    %v175 = vlaneseq
    %v176 = vshrl.u32 %v175, 7
    %v177 = vsub.s32 0, %v176
    %v178 = vrot.slane %v173, %v177
    %180 = vmatprep.subr.mxu0 0.0
    %181 = vmatpush1.msra.mxu0 %v172
    %182 = vmatprep.subr.mxu0 0.0
    %183 = vmatpush1.msra.mxu0 %v171
    %184 = vmatprep.subr.mxu0 0.0
    %185 = vmatpush1.msra.mxu0 %v170
    %186 = vmatprep.subr.mxu0 0.0
    %187 = vmatpush1.msra.mxu0 %v169
    %188 = vmatprep.subr.mxu0 0.0
    %189 = vmatpush1.msra.mxu0 %v168
    %190 = vmatprep.subr.mxu0 0.0
    %191 = vmatpush1.msra.mxu0 %v167
    %192 = vmatprep.subr.mxu0 0.0
    %193 = vmatpush1.msra.mxu0 %v166
    %194 = vmatprep.subr.mxu0 0.0
    %195 = vmatpush1.msra.mxu0 %v165
    %196 = vmatprep.subr.mxu0 0.0
    %197 = vmatpush1.msra.mxu0 %v164
    %198 = vmatprep.subr.mxu0 0.0
    %199 = vmatpush1.msra.mxu0 %v163
    %200 = vmatprep.subr.mxu0 0.0
    %201 = vmatpush1.msra.mxu0 %v162
    %202 = vmatprep.subr.mxu0 0.0
    %203 = vmatpush1.msra.mxu0 %v161
    %204 = vmatprep.subr.mxu0 0.0
    %205 = vmatpush1.msra.mxu0 %v160
    %206 = vmatprep.subr.mxu0 0.0
    %207 = vmatpush1.msra.mxu0 %v159
    %208 = vmatprep.subr.mxu0 0.0
    %209 = vmatpush1.msra.mxu0 %v158
    %210 = vmatprep.subr.mxu0 0.0
    %211 = vmatpush1.msra.mxu0 %v157
    %212 = vmatprep.subr.mxu0 0.0
    %213 = vmatpush2.msra.mxu0 0.0
    %214 = vmatprep.subr.mxu0 0.0
    %215 = vmatpush2.msra.mxu0 0.0
    %216 = vmatprep.subr.mxu0 0.0
    %217 = vmatpush2.msra.mxu0 0.0
    %218 = vmatprep.subr.mxu0 0.0
    %219 = vmatpush2.msra.mxu0 0.0
    %220 = vmatprep.subr.mxu0 0.0
    %221 = vmatpush2.msra.mxu0 0.0
    %222 = vmatprep.subr.mxu0 0.0
    %223 = vmatpush2.msra.mxu0 0.0
    %224 = vmatprep.subr.mxu0 0.0
    %225 = vmatpush2.msra.mxu0 0.0
    %226 = vmatprep.subr.mxu0 0.0
    %227 = vmatpush2.msra.mxu0 0.0
    %228 = vmatprep.subr.mxu0 0.0
    %229 = vmatpush2.msra.mxu0 0.0
    %230 = vmatprep.subr.mxu0 0.0
    %231 = vmatpush2.msra.mxu0 0.0
    %232 = vmatprep.subr.mxu0 0.0
    %233 = vmatpush2.msra.mxu0 0.0
    %234 = vmatprep.subr.mxu0 0.0
    %235 = vmatpush2.msra.mxu0 0.0
    %236 = vmatprep.subr.mxu0 0.0
    %237 = vmatpush2.msra.mxu0 0.0
    %238 = vmatprep.subr.mxu0 0.0
    %239 = vmatpush2.msra.mxu0 0.0
    %240 = vmatprep.subr.mxu0 0.0
    %241 = vmatpush2.msra.mxu0 0.0
    %242 = vmatprep.subr.mxu0 0.0
    %243 = vmatpush2.msra.mxu0 0.0
    %244 = vmatprep.mubr.f32.mxu0 0.0
    %245 = vmatmul.mubr.f32.gmra.mxu0 %v155
    %v246 = vpop.f32.mrf.mxu0
    %v247 = vadd.f32 %v178, %v246
    %v248 = vpop.f32.mrf.mxu0
    %249 = vmatprep.mubr.f32.mxu0 0.0
    %250 = vmatmul.mubr.f32.gmra.mxu0 %v156
    %v251 = vpop.f32.mrf.mxu0
    %v252 = vadd.f32 %v178, %v251
    %v253 = vpop.f32.mrf.mxu0
    %254 = vdwg.mxu0
    %255 = vst [vmem:[#allocation8] sm:$0xff] %v247
    %256 = vst [vmem:[#allocation8 + $0x8] sm:$0xff] %v252
    // Predicated region
    $region34: #{tpu_custom_call.1} parent=1 // pred_check
      _
    $region35: #{tpu_custom_call.1} parent=1 // pred_check_branch
      %258 = sbr.rel (0) target = $region37
    $region36: #{tpu_custom_call.1} parent=1 // pred_region
      %s260 = ssub.s32 256, 256
      %261 = vsyncadd [#allocation4], %s260
      %s262 = sshll.u32 [#allocation8], 4
      %s263 = int_to_ptr.vmem [resolvable:$true] %s262
      %268 = dma.vmem_to_hbm [thread:$0]  %s263, 256, %s5, [#allocation4], 128, 128, 8
    $region37: #{tpu_custom_call.1} parent=1 // pred_fallthru
      _
    // Predicated region
    $region38: #{tpu_custom_call.1} parent=1 // pred_check
      _
    $region39: #{tpu_custom_call.1} parent=1 // pred_check_branch
      %270 = sbr.rel (0) target = $region41
    $region40: #{tpu_custom_call.1} parent=1 // pred_region
      %271 = dma.done [#allocation4], 256
    $region41: #{tpu_custom_call.1} parent=1 // pred_fallthru
      _
    %272 = vsyncpa [#allocation3], 1
    %273 = vsyncpa [#allocation6], 1
    %274 = vsyncpa [#allocation4], 1

</llo_original>
